<compile_context>
chip_gen: v6e
topology: v6e:2x2x1
jax: 0.10.0
libtpu: 0.0.40
codegen_flags: <defaults>
</compile_context>

<pallas_src>
import math

import jax
import jax.numpy as jnp
from jax.experimental import pallas as pl
from jax.experimental.pallas import tpu as pltpu

DICE_WEIGHT = 0.6
FOCAL_WEIGHT = 0.4
DICE_SMOOTH = 1.0
FOCAL_ALPHA = 0.75
FOCAL_EPS = 1e-6
# FocalLoss gamma == 2 in the reference module -> explicit squares below.

_LANE = 128
_SUBLANE = 8
# ~1 MiB of f32-equivalent elements per input block (>= the 512x512-f32 tile
# that already sits at ~85% of HBM roofline in measurements).
_TARGET_TILE_ELEMS = 256 * 1024
# Pad value for the logits when the feature axis is padded: sigmoid(-1e4) == 0
# and BCEWithLogits(-1e4, 0) == 0 exactly in f32, so padded elements add exactly
# zero to every accumulator -> no per-block masking work in the kernel.
_PAD_LOGIT = -1.0e4


def _round_up(a, b):
    return (a + b - 1) // b * b


def _pick_tile_n(n):
    """Largest batch-block size <= 8 that divides n (keeps VMEM bounded for any n)."""
    if n <= _SUBLANE:
        return n
    for cand in range(_SUBLANE, 0, -1):
        if n % cand == 0:
            return cand
    return 1


def _dice_focal_kernel(x_ref, t_ref,
                       inter_ref, psum_ref, tsum_ref, fsum_ref,
                       inter_acc, psum_acc, tsum_acc, fsum_acc):
    # x_ref, t_ref: (tile_n, tile_r, 128) VMEM blocks in native dtype.
    # *_ref outputs: (tile_n, 1) f32 per-sample partial sums for this split.
    # *_acc scratch: (tile_n, 128) f32 accumulators (cross-lane reduce only once
    #                per (batch block, split) at the end).
    k = pl.program_id(2)

    @pl.when(k == 0)
    def _():
        inter_acc[...] = jnp.zeros_like(inter_acc)
        psum_acc[...] = jnp.zeros_like(psum_acc)
        tsum_acc[...] = jnp.zeros_like(tsum_acc)
        fsum_acc[...] = jnp.zeros_like(fsum_acc)

    x = x_ref[...].astype(jnp.float32)
    t = t_ref[...].astype(jnp.float32)

    # One exp per element, shared by sigmoid and the stable BCE-with-logits.
    e = jnp.exp(-jnp.abs(x))
    inv = 1.0 / (1.0 + e)                       # exact (matches torch ~1e-7)
    p = jnp.where(x >= 0, inv, e * inv)         # sigmoid(x)
    bce = jnp.maximum(x, 0.0) - x * t + jnp.log1p(e)

    pt = jnp.clip(p, FOCAL_EPS, 1.0 - FOCAL_EPS)
    omp = 1.0 - pt
    fw = t * (FOCAL_ALPHA * omp * omp) + (1.0 - t) * ((1.0 - FOCAL_ALPHA) * pt * pt)
    fl = fw * bce

    # Reduce only across the row (sublane-block) axis per step; keep 128 lanes
    # wide so the cross-lane XLU reduction happens once at the end.
    inter_acc[...] += jnp.sum(p * t, axis=1)
    psum_acc[...] += jnp.sum(p, axis=1)
    tsum_acc[...] += jnp.sum(t, axis=1)
    fsum_acc[...] += jnp.sum(fl, axis=1)

    @pl.when(k == pl.num_programs(2) - 1)
    def _():
        inter_ref[...] = jnp.sum(inter_acc[...], axis=1, keepdims=True)
        psum_ref[...] = jnp.sum(psum_acc[...], axis=1, keepdims=True)
        tsum_ref[...] = jnp.sum(tsum_acc[...], axis=1, keepdims=True)
        fsum_ref[...] = jnp.sum(fsum_acc[...], axis=1, keepdims=True)


def dice_focal_loss(inputs, targets):
    """inputs: logits (N, C, H, W) (any float dtype); targets: same shape. Scalar f32."""
    n = inputs.shape[0]
    d = int(math.prod(inputs.shape[1:]))

    # Keep native dtype: the kernel casts to f32 internally, so bf16 inputs
    # halve HBM traffic for this bandwidth-bound kernel.
    x = inputs.reshape(n, d)
    t = targets.reshape(n, d)

    # Batch tiling: leading block dim (no (8,128) constraint), always <= 8.
    tile_n = _pick_tile_n(n)
    num_n = n // tile_n

    # Feature tiling: view features as (rows, 128) lanes; tile over rows.
    r_needed = pl.cdiv(d, _LANE)
    tile_r = max(_SUBLANE,
                 (_TARGET_TILE_ELEMS // (tile_n * _LANE)) // _SUBLANE * _SUBLANE)
    tile_r = min(tile_r, _round_up(r_needed, _SUBLANE))
    r_pad = _round_up(r_needed, tile_r)
    num_d = r_pad // tile_r
    d_pad = r_pad * _LANE

    if d_pad != d:
        # Value-based "masking": padded logits contribute exactly zero to every
        # partial sum, so the kernel needs no iota/compare/select work.
        # TODO(synk): the pad is one extra HBM round trip; a tail-block kernel
        # would avoid it for very large non-multiple-of-128 feature dims.
        x = jnp.pad(x, ((0, 0), (0, d_pad - d)), constant_values=_PAD_LOGIT)
        t = jnp.pad(t, ((0, 0), (0, d_pad - d)))
    x = x.reshape(n, r_pad, _LANE)
    t = t.reshape(n, r_pad, _LANE)

    # Split the reduction axis in two when the batch axis alone cannot feed both
    # v7x TensorCores; partial sums are combined in JAX below.
    n_split = 2 if (num_n == 1 and num_d >= 2 and num_d % 2 == 0) else 1
    num_k = num_d // n_split

    in_block = lambda i, s, k: (i, s * num_k + k, 0)
    out_block = lambda i, s, k: (i, s)

    bytes_accessed = (int(x.size) * x.dtype.itemsize
                      + int(t.size) * t.dtype.itemsize
                      + 4 * n * n_split * 4)
    cost = pl.CostEstimate(flops=24 * n * d_pad,
                           transcendentals=2 * n * d_pad,
                           bytes_accessed=bytes_accessed)

    inter, psum, tsum, fsum = pl.pallas_call(
        _dice_focal_kernel,
        out_shape=tuple(jax.ShapeDtypeStruct((n, n_split), jnp.float32)
                        for _ in range(4)),
        grid_spec=pltpu.PrefetchScalarGridSpec(
            num_scalar_prefetch=0,
            grid=(num_n, n_split, num_k),
            in_specs=[
                pl.BlockSpec((tile_n, tile_r, _LANE), in_block),
                pl.BlockSpec((tile_n, tile_r, _LANE), in_block),
            ],
            out_specs=[pl.BlockSpec((tile_n, 1), out_block) for _ in range(4)],
            scratch_shapes=[pltpu.VMEM((tile_n, _LANE), jnp.float32)] * 4,
        ),
        compiler_params=pltpu.CompilerParams(
            dimension_semantics=("parallel", "parallel", "arbitrary")),
        cost_estimate=cost,
    )(x, t)

    # Final scalar combine (a handful of tiny ops) in plain JAX.
    inter = jnp.sum(inter, axis=1)
    psum = jnp.sum(psum, axis=1)
    tsum = jnp.sum(tsum, axis=1)
    focal_sum = jnp.sum(fsum)

    dice_score = (2.0 * inter + DICE_SMOOTH) / (psum + tsum + DICE_SMOOTH)
    dice_loss = 1.0 - jnp.mean(dice_score)
    focal_loss = focal_sum / (n * d)          # true element count, not padded
    return (DICE_WEIGHT * dice_loss + FOCAL_WEIGHT * focal_loss).astype(jnp.float32)


def _reference(inputs, targets):
    # Pure-JAX reference mirroring the PyTorch module, for sanity checking.
    n = inputs.shape[0]
    x = inputs.reshape(n, -1).astype(jnp.float32)
    t = targets.reshape(n, -1).astype(jnp.float32)
    p = jax.nn.sigmoid(x)
    inter = jnp.sum(p * t, axis=1)
    dice_score = (2.0 * inter + DICE_SMOOTH) / (
        jnp.sum(p, axis=1) + jnp.sum(t, axis=1) + DICE_SMOOTH)
    dice_loss = 1.0 - jnp.mean(dice_score)
    bce = jnp.maximum(x, 0.0) - x * t + jnp.log1p(jnp.exp(-jnp.abs(x)))
    pt = jnp.clip(p, FOCAL_EPS, 1.0 - FOCAL_EPS)
    fw = FOCAL_ALPHA * (1.0 - pt) ** 2 * t + (1.0 - FOCAL_ALPHA) * pt ** 2 * (1.0 - t)
    focal_loss = jnp.mean(fw * bce)
    return DICE_WEIGHT * dice_loss + FOCAL_WEIGHT * focal_loss


if __name__ == "__main__":
    key = jax.random.PRNGKey(0)
    k_x, k_t = jax.random.split(key)
    N, C, H, W = 2, 4, 16, 16
    inputs = jax.random.normal(k_x, (N, C, H, W), dtype=jnp.float32)
    targets = jax.random.bernoulli(k_t, p=0.3, shape=(N, C, H, W)).astype(jnp.float32)

    loss = jax.block_until_ready(jax.jit(dice_focal_loss)(inputs, targets))
    ref = jax.block_until_ready(_reference(inputs, targets))
    assert jnp.allclose(loss, ref, atol=1e-5, rtol=1e-4), (loss, ref)
    print("KERNEL_OK")
</pallas_src>

<mosaic_0001>
module attributes {stable_mosaic.version = 11 : i64} {
  func.func @_dice_focal_kernel(%arg0: i32, %arg1: i32, %arg2: i32, %arg3: memref<2x8x128xf32, #tpu.memory_space<vmem>>, %arg4: memref<2x8x128xf32, #tpu.memory_space<vmem>>, %arg5: memref<2x1xf32, #tpu.memory_space<vmem>>, %arg6: memref<2x1xf32, #tpu.memory_space<vmem>>, %arg7: memref<2x1xf32, #tpu.memory_space<vmem>>, %arg8: memref<2x1xf32, #tpu.memory_space<vmem>>, %arg9: memref<2x128xf32, #tpu.memory_space<vmem>>, %arg10: memref<2x128xf32, #tpu.memory_space<vmem>>, %arg11: memref<2x128xf32, #tpu.memory_space<vmem>>, %arg12: memref<2x128xf32, #tpu.memory_space<vmem>>) attributes {dimension_semantics = [#tpu.dimension_semantics<parallel>, #tpu.dimension_semantics<parallel>, #tpu.dimension_semantics<arbitrary>], iteration_bounds = array<i64: 1, 1, 1>, scalar_prefetch = 0 : i64, scratch_operands = 4 : i64, tpu.core_type = #tpu.core_type<tc>, window_params = [{transform_indices = @transform_0, window_bounds = array<i64: 2, 8, 128>}, {transform_indices = @transform_1, window_bounds = array<i64: 2, 8, 128>}, {transform_indices = @transform_2, window_bounds = array<i64: 2, 1>}, {transform_indices = @transform_3, window_bounds = array<i64: 2, 1>}, {transform_indices = @transform_4, window_bounds = array<i64: 2, 1>}, {transform_indices = @transform_5, window_bounds = array<i64: 2, 1>}]} {
    %c0_i32 = arith.constant 0 : i32
    %0 = arith.cmpi eq, %arg2, %c0_i32 : i32
    %1 = arith.extui %0 : i1 to i32
    %c0_i32_0 = arith.constant 0 : i32
    %2 = arith.cmpi ne, %1, %c0_i32_0 : i32
    scf.if %2 {
      %cst_38 = arith.constant 0.000000e+00 : f32
      %61 = vector.broadcast %cst_38 : f32 to vector<2x128xf32>
      %c0_39 = arith.constant 0 : index
      %c0_40 = arith.constant 0 : index
      %62 = vector.load %arg9[%c0_39, %c0_40] : memref<2x128xf32, #tpu.memory_space<vmem>>, vector<2x128xf32>
      tpu.vector_store %arg9[%c0_39, %c0_40], %61 {strides = array<i32>} : memref<2x128xf32, #tpu.memory_space<vmem>>, vector<2x128xf32>,
      %cst_41 = arith.constant 0.000000e+00 : f32
      %63 = vector.broadcast %cst_41 : f32 to vector<2x128xf32>
      %c0_42 = arith.constant 0 : index
      %c0_43 = arith.constant 0 : index
      %64 = vector.load %arg10[%c0_42, %c0_43] : memref<2x128xf32, #tpu.memory_space<vmem>>, vector<2x128xf32>
      tpu.vector_store %arg10[%c0_42, %c0_43], %63 {strides = array<i32>} : memref<2x128xf32, #tpu.memory_space<vmem>>, vector<2x128xf32>,
      %cst_44 = arith.constant 0.000000e+00 : f32
      %65 = vector.broadcast %cst_44 : f32 to vector<2x128xf32>
      %c0_45 = arith.constant 0 : index
      %c0_46 = arith.constant 0 : index
      %66 = vector.load %arg11[%c0_45, %c0_46] : memref<2x128xf32, #tpu.memory_space<vmem>>, vector<2x128xf32>
      tpu.vector_store %arg11[%c0_45, %c0_46], %65 {strides = array<i32>} : memref<2x128xf32, #tpu.memory_space<vmem>>, vector<2x128xf32>,
      %cst_47 = arith.constant 0.000000e+00 : f32
      %67 = vector.broadcast %cst_47 : f32 to vector<2x128xf32>
      %c0_48 = arith.constant 0 : index
      %c0_49 = arith.constant 0 : index
      %68 = vector.load %arg12[%c0_48, %c0_49] : memref<2x128xf32, #tpu.memory_space<vmem>>, vector<2x128xf32>
      tpu.vector_store %arg12[%c0_48, %c0_49], %67 {strides = array<i32>} : memref<2x128xf32, #tpu.memory_space<vmem>>, vector<2x128xf32>,
    } else {
    }
    %c0 = arith.constant 0 : index
    %c0_1 = arith.constant 0 : index
    %c0_2 = arith.constant 0 : index
    %3 = vector.load %arg3[%c0, %c0_1, %c0_2] : memref<2x8x128xf32, #tpu.memory_space<vmem>>, vector<2x8x128xf32>
    %c0_3 = arith.constant 0 : index
    %c0_4 = arith.constant 0 : index
    %c0_5 = arith.constant 0 : index
    %4 = vector.load %arg4[%c0_3, %c0_4, %c0_5] : memref<2x8x128xf32, #tpu.memory_space<vmem>>, vector<2x8x128xf32>
    %5 = math.absf %3 : vector<2x8x128xf32>
    %cst = arith.constant 0.000000e+00 : f32
    %6 = vector.broadcast %cst : f32 to vector<2x8x128xf32>
    %7 = arith.subf %6, %5 : vector<2x8x128xf32>
    %8 = math.exp %7 : vector<2x8x128xf32>
    %cst_6 = arith.constant 1.000000e+00 : f32
    %9 = vector.broadcast %cst_6 : f32 to vector<2x8x128xf32>
    %10 = arith.addf %9, %8 : vector<2x8x128xf32>
    %cst_7 = arith.constant 1.000000e+00 : f32
    %11 = vector.broadcast %cst_7 : f32 to vector<2x8x128xf32>
    %12 = arith.divf %11, %10 : vector<2x8x128xf32>
    %cst_8 = arith.constant 0.000000e+00 : f32
    %13 = vector.broadcast %cst_8 : f32 to vector<2x8x128xf32>
    %14 = arith.cmpf oge, %3, %13 : vector<2x8x128xf32>
    %15 = arith.mulf %8, %12 : vector<2x8x128xf32>
    %16 = arith.select %14, %12, %15 : vector<2x8x128xi1>, vector<2x8x128xf32>
    %cst_9 = arith.constant 0.000000e+00 : f32
    %17 = vector.broadcast %cst_9 : f32 to vector<2x8x128xf32>
    %18 = arith.maximumf %3, %17 : vector<2x8x128xf32>
    %19 = arith.mulf %3, %4 : vector<2x8x128xf32>
    %20 = arith.subf %18, %19 : vector<2x8x128xf32>
    %21 = math.log1p %8 : vector<2x8x128xf32>
    %22 = arith.addf %20, %21 : vector<2x8x128xf32>
    %cst_10 = arith.constant 9.99999997E-7 : f32
    %cst_11 = arith.constant 0.999998986 : f32
    %23 = vector.broadcast %cst_10 : f32 to vector<2x8x128xf32>
    %24 = arith.maximumf %23, %16 : vector<2x8x128xf32>
    %25 = vector.broadcast %cst_11 : f32 to vector<2x8x128xf32>
    %26 = arith.minimumf %25, %24 : vector<2x8x128xf32>
    %cst_12 = arith.constant 1.000000e+00 : f32
    %27 = vector.broadcast %cst_12 : f32 to vector<2x8x128xf32>
    %28 = arith.subf %27, %26 : vector<2x8x128xf32>
    %cst_13 = arith.constant 7.500000e-01 : f32
    %29 = vector.broadcast %cst_13 : f32 to vector<2x8x128xf32>
    %30 = arith.mulf %29, %28 : vector<2x8x128xf32>
    %31 = arith.mulf %30, %28 : vector<2x8x128xf32>
    %32 = arith.mulf %4, %31 : vector<2x8x128xf32>
    %cst_14 = arith.constant 1.000000e+00 : f32
    %33 = vector.broadcast %cst_14 : f32 to vector<2x8x128xf32>
    %34 = arith.subf %33, %4 : vector<2x8x128xf32>
    %cst_15 = arith.constant 2.500000e-01 : f32
    %35 = vector.broadcast %cst_15 : f32 to vector<2x8x128xf32>
    %36 = arith.mulf %35, %26 : vector<2x8x128xf32>
    %37 = arith.mulf %36, %26 : vector<2x8x128xf32>
    %38 = arith.mulf %34, %37 : vector<2x8x128xf32>
    %39 = arith.addf %32, %38 : vector<2x8x128xf32>
    %40 = arith.mulf %39, %22 : vector<2x8x128xf32>
    %c0_16 = arith.constant 0 : index
    %c0_17 = arith.constant 0 : index
    %41 = vector.load %arg9[%c0_16, %c0_17] : memref<2x128xf32, #tpu.memory_space<vmem>>, vector<2x128xf32>
    %42 = arith.mulf %16, %4 : vector<2x8x128xf32>
    %cst_18 = arith.constant dense<0.000000e+00> : vector<2x128xf32>
    %43 = vector.multi_reduction <add>, %42, %cst_18 [1] : vector<2x8x128xf32> to vector<2x128xf32>
    %44 = arith.addf %41, %43 : vector<2x128xf32>
    %c0_19 = arith.constant 0 : index
    %c0_20 = arith.constant 0 : index
    %45 = vector.load %arg9[%c0_19, %c0_20] : memref<2x128xf32, #tpu.memory_space<vmem>>, vector<2x128xf32>
    tpu.vector_store %arg9[%c0_19, %c0_20], %44 {strides = array<i32>} : memref<2x128xf32, #tpu.memory_space<vmem>>, vector<2x128xf32>,
    %c0_21 = arith.constant 0 : index
    %c0_22 = arith.constant 0 : index
    %46 = vector.load %arg10[%c0_21, %c0_22] : memref<2x128xf32, #tpu.memory_space<vmem>>, vector<2x128xf32>
    %cst_23 = arith.constant dense<0.000000e+00> : vector<2x128xf32>
    %47 = vector.multi_reduction <add>, %16, %cst_23 [1] : vector<2x8x128xf32> to vector<2x128xf32>
    %48 = arith.addf %46, %47 : vector<2x128xf32>
    %c0_24 = arith.constant 0 : index
    %c0_25 = arith.constant 0 : index
    %49 = vector.load %arg10[%c0_24, %c0_25] : memref<2x128xf32, #tpu.memory_space<vmem>>, vector<2x128xf32>
    tpu.vector_store %arg10[%c0_24, %c0_25], %48 {strides = array<i32>} : memref<2x128xf32, #tpu.memory_space<vmem>>, vector<2x128xf32>,
    %c0_26 = arith.constant 0 : index
    %c0_27 = arith.constant 0 : index
    %50 = vector.load %arg11[%c0_26, %c0_27] : memref<2x128xf32, #tpu.memory_space<vmem>>, vector<2x128xf32>
    %cst_28 = arith.constant dense<0.000000e+00> : vector<2x128xf32>
    %51 = vector.multi_reduction <add>, %4, %cst_28 [1] : vector<2x8x128xf32> to vector<2x128xf32>
    %52 = arith.addf %50, %51 : vector<2x128xf32>
    %c0_29 = arith.constant 0 : index
    %c0_30 = arith.constant 0 : index
    %53 = vector.load %arg11[%c0_29, %c0_30] : memref<2x128xf32, #tpu.memory_space<vmem>>, vector<2x128xf32>
    tpu.vector_store %arg11[%c0_29, %c0_30], %52 {strides = array<i32>} : memref<2x128xf32, #tpu.memory_space<vmem>>, vector<2x128xf32>,
    %c0_31 = arith.constant 0 : index
    %c0_32 = arith.constant 0 : index
    %54 = vector.load %arg12[%c0_31, %c0_32] : memref<2x128xf32, #tpu.memory_space<vmem>>, vector<2x128xf32>
    %cst_33 = arith.constant dense<0.000000e+00> : vector<2x128xf32>
    %55 = vector.multi_reduction <add>, %40, %cst_33 [1] : vector<2x8x128xf32> to vector<2x128xf32>
    %56 = arith.addf %54, %55 : vector<2x128xf32>
    %c0_34 = arith.constant 0 : index
    %c0_35 = arith.constant 0 : index
    %57 = vector.load %arg12[%c0_34, %c0_35] : memref<2x128xf32, #tpu.memory_space<vmem>>, vector<2x128xf32>
    tpu.vector_store %arg12[%c0_34, %c0_35], %56 {strides = array<i32>} : memref<2x128xf32, #tpu.memory_space<vmem>>, vector<2x128xf32>,
    %c0_i32_36 = arith.constant 0 : i32
    %58 = arith.cmpi eq, %arg2, %c0_i32_36 : i32
    %59 = arith.extui %58 : i1 to i32
    %c0_i32_37 = arith.constant 0 : i32
    %60 = arith.cmpi ne, %59, %c0_i32_37 : i32
    scf.if %60 {
      %c0_38 = arith.constant 0 : index
      %c0_39 = arith.constant 0 : index
      %61 = vector.load %arg9[%c0_38, %c0_39] : memref<2x128xf32, #tpu.memory_space<vmem>>, vector<2x128xf32>
      %cst_40 = arith.constant dense<0.000000e+00> : vector<2xf32>
      %62 = vector.multi_reduction <add>, %61, %cst_40 [1] : vector<2x128xf32> to vector<2xf32>
      %63 = vector.shape_cast %62 : vector<2xf32> to vector<2x1xf32>
      %c0_41 = arith.constant 0 : index
      %c0_42 = arith.constant 0 : index
      %64 = vector.load %arg5[%c0_41, %c0_42] : memref<2x1xf32, #tpu.memory_space<vmem>>, vector<2x1xf32>
      tpu.vector_store %arg5[%c0_41, %c0_42], %63 {strides = array<i32>} : memref<2x1xf32, #tpu.memory_space<vmem>>, vector<2x1xf32>,
      %c0_43 = arith.constant 0 : index
      %c0_44 = arith.constant 0 : index
      %65 = vector.load %arg10[%c0_43, %c0_44] : memref<2x128xf32, #tpu.memory_space<vmem>>, vector<2x128xf32>
      %cst_45 = arith.constant dense<0.000000e+00> : vector<2xf32>
      %66 = vector.multi_reduction <add>, %65, %cst_45 [1] : vector<2x128xf32> to vector<2xf32>
      %67 = vector.shape_cast %66 : vector<2xf32> to vector<2x1xf32>
      %c0_46 = arith.constant 0 : index
      %c0_47 = arith.constant 0 : index
      %68 = vector.load %arg6[%c0_46, %c0_47] : memref<2x1xf32, #tpu.memory_space<vmem>>, vector<2x1xf32>
      tpu.vector_store %arg6[%c0_46, %c0_47], %67 {strides = array<i32>} : memref<2x1xf32, #tpu.memory_space<vmem>>, vector<2x1xf32>,
      %c0_48 = arith.constant 0 : index
      %c0_49 = arith.constant 0 : index
      %69 = vector.load %arg11[%c0_48, %c0_49] : memref<2x128xf32, #tpu.memory_space<vmem>>, vector<2x128xf32>
      %cst_50 = arith.constant dense<0.000000e+00> : vector<2xf32>
      %70 = vector.multi_reduction <add>, %69, %cst_50 [1] : vector<2x128xf32> to vector<2xf32>
      %71 = vector.shape_cast %70 : vector<2xf32> to vector<2x1xf32>
      %c0_51 = arith.constant 0 : index
      %c0_52 = arith.constant 0 : index
      %72 = vector.load %arg7[%c0_51, %c0_52] : memref<2x1xf32, #tpu.memory_space<vmem>>, vector<2x1xf32>
      tpu.vector_store %arg7[%c0_51, %c0_52], %71 {strides = array<i32>} : memref<2x1xf32, #tpu.memory_space<vmem>>, vector<2x1xf32>,
      %c0_53 = arith.constant 0 : index
      %c0_54 = arith.constant 0 : index
      %73 = vector.load %arg12[%c0_53, %c0_54] : memref<2x128xf32, #tpu.memory_space<vmem>>, vector<2x128xf32>
      %cst_55 = arith.constant dense<0.000000e+00> : vector<2xf32>
      %74 = vector.multi_reduction <add>, %73, %cst_55 [1] : vector<2x128xf32> to vector<2xf32>
      %75 = vector.shape_cast %74 : vector<2xf32> to vector<2x1xf32>
      %c0_56 = arith.constant 0 : index
      %c0_57 = arith.constant 0 : index
      %76 = vector.load %arg8[%c0_56, %c0_57] : memref<2x1xf32, #tpu.memory_space<vmem>>, vector<2x1xf32>
      tpu.vector_store %arg8[%c0_56, %c0_57], %75 {strides = array<i32>} : memref<2x1xf32, #tpu.memory_space<vmem>>, vector<2x1xf32>,
    } else {
    }
    return
  }
  func.func @transform_0(%arg0: i32, %arg1: i32, %arg2: i32) -> (i32, i32, i32) {
    %c1_i32 = arith.constant 1 : i32
    %0 = arith.muli %arg1, %c1_i32 : i32
    %1 = arith.addi %0, %arg2 : i32
    %c0_i32 = arith.constant 0 : i32
    %c0_i32_0 = arith.constant 0 : i32
    return %arg0, %1, %c0_i32 : i32, i32, i32
  }
  func.func @transform_1(%arg0: i32, %arg1: i32, %arg2: i32) -> (i32, i32, i32) {
    %c1_i32 = arith.constant 1 : i32
    %0 = arith.muli %arg1, %c1_i32 : i32
    %1 = arith.addi %0, %arg2 : i32
    %c0_i32 = arith.constant 0 : i32
    %c0_i32_0 = arith.constant 0 : i32
    return %arg0, %1, %c0_i32 : i32, i32, i32
  }
  func.func @transform_2(%arg0: i32, %arg1: i32, %arg2: i32) -> (i32, i32) {
    %c0_i32 = arith.constant 0 : i32
    return %arg0, %arg1 : i32, i32
  }
  func.func @transform_3(%arg0: i32, %arg1: i32, %arg2: i32) -> (i32, i32) {
    %c0_i32 = arith.constant 0 : i32
    return %arg0, %arg1 : i32, i32
  }
  func.func @transform_4(%arg0: i32, %arg1: i32, %arg2: i32) -> (i32, i32) {
    %c0_i32 = arith.constant 0 : i32
    return %arg0, %arg1 : i32, i32
  }
  func.func @transform_5(%arg0: i32, %arg1: i32, %arg2: i32) -> (i32, i32) {
    %c0_i32 = arith.constant 0 : i32
    return %arg0, %arg1 : i32, i32
  }
}

</mosaic_0001>

<llo_original>
// kernel: dice_focal_loss.1
$region0: #{dice_focal_loss.1}
  #allocation0 [shape = 'u32[]', space=smem, size = 0x4, offset = 0x4, fixed_abs, tag = 'smem constant byte address 0x4 - core index']
  #allocation1 [shape = 'u32[144,128]{1,0:T(1,128)}', space=vmem, size = 0x12000, scoped, tag = 'internal scratch']
  #allocation2 [shape = 'f32[2,128]{1,0:T(2,128)}', space=vmem, size = 0x400, scoped, tag = 'scratch operand']
  #allocation3 [shape = 'f32[2,128]{1,0:T(2,128)}', space=vmem, size = 0x400, scoped, tag = 'scratch operand']
  #allocation4 [shape = 'f32[2,128]{1,0:T(2,128)}', space=vmem, size = 0x400, scoped, tag = 'scratch operand']
  #allocation5 [shape = 'f32[2,128]{1,0:T(2,128)}', space=vmem, size = 0x400, scoped, tag = 'scratch operand']
  %s0 = inlined_call_operand.vmem [shape: f32[2,8,128], index: 0, kind: input, shape index: {}]
  %s1 = inlined_call_operand.vmem [shape: f32[2,8,128], index: 1, kind: input, shape index: {}]
  %s2 = inlined_call_operand.vmem [shape: f32[2,1], index: 2, kind: output, shape index: {0}]
  %s3 = inlined_call_operand.vmem [shape: f32[2,1], index: 3, kind: output, shape index: {1}]
  %s4 = inlined_call_operand.vmem [shape: f32[2,1], index: 4, kind: output, shape index: {2}]
  %s5 = inlined_call_operand.vmem [shape: f32[2,1], index: 5, kind: output, shape index: {3}]
  %6 = xla_tuple %s2, %s3, %s4, %s5
  %s7 = sld [smem:[#allocation0]]
  $region50: #{dice_focal_loss.1} parent=0
    _
  %s9 = ssub.s32 1, %s7
  %s10 = scalar_select 0, %s9, %s7
  // Predicated region
  $region2: #{dice_focal_loss.1} parent=0 // pred_check
    _
  $region3: #{dice_focal_loss.1} parent=0 // pred_check_branch
    %12 = sbr.rel (0) target = $region5
  $region4: #{dice_focal_loss.1} parent=0 // pred_region
    %s13 = sadd.s32 0, 0
    %p14 = scmp.lt.s32.totalorder %s13, 0
    %s15 = scalar_select %p14, %s13, 0
    %s16 = smul.addr %s15, 8
    %s17 = scalar_lea.vmem %s0, %s16
    %s18 = sadd.s32 0, 0
  $region5: #{dice_focal_loss.1} parent=0 // pred_fallthru
    _
  // Predicated region
  $region6: #{dice_focal_loss.1} parent=0 // pred_check
    _
  $region7: #{dice_focal_loss.1} parent=0 // pred_check_branch
    %20 = sbr.rel (0) target = $region9
  $region8: #{dice_focal_loss.1} parent=0 // pred_region
    %s21 = sadd.s32 0, 0
    %p22 = scmp.lt.s32.totalorder %s21, 0
    %s23 = scalar_select %p22, %s21, 0
    %s24 = smul.addr %s23, 8
    %s25 = scalar_lea.vmem %s1, %s24
    %s26 = sadd.s32 0, 0
  $region9: #{dice_focal_loss.1} parent=0 // pred_fallthru
    _
  %s27 = sadd.s32 0, 0
  %p28 = scmp.lt.s32.totalorder %s27, 0
  %s29 = scalar_select %p28, %s27, 0
  %s30 = smul.addr %s29, 8
  %s31 = scalar_lea.vmem %s0, %s30
  %s32 = sadd.s32 0, 0
  %p33 = scmp.lt.s32.totalorder %s32, 0
  %s34 = scalar_select %p33, %s32, 0
  %s35 = smul.addr %s34, 8
  %s36 = scalar_lea.vmem %s1, %s35
  %s37 = sadd.s32 0, 0
  %p38 = scmp.lt.s32.totalorder %s37, 0
  %s39 = scalar_select %p38, %s37, 0
  %s40 = smul.addr %s39, 8
  %s41 = scalar_lea.vmem %s0, %s40
  %s42 = sadd.s32 0, 0
  %s43 = sadd.s32 0, 0
  %p44 = scmp.lt.s32.totalorder %s43, 0
  %s45 = scalar_select %p44, %s43, 0
  %s46 = smul.addr %s45, 8
  %s47 = scalar_lea.vmem %s1, %s46
  %s48 = sadd.s32 0, 0
  %p49 = scmp.eq.s32.totalorder 0, 0
  // Predicated region
  $region10: #{dice_focal_loss.1} parent=0 // pred_check
    %p50 = pneg %p49
  $region11: #{dice_focal_loss.1} parent=0 // pred_check_branch
    %52 = sbr.rel (%p50) target = $region13
  $region12: #{dice_focal_loss.1} parent=0 // pred_region
    %53 = vst [vmem:[#allocation2] sm:$0x3] 0.0
    %54 = vst [vmem:[#allocation3] sm:$0x3] 0.0
    %55 = vst [vmem:[#allocation4] sm:$0x3] 0.0
    %56 = vst [vmem:[#allocation5] sm:$0x3] 0.0
  $region13: #{dice_focal_loss.1} parent=0 // pred_fallthru
    _
  %v57 = vld [vmem:[%s41] sm:$0xff]
  %v58 = vld [vmem:[%s41 + $0x8] sm:$0xff]
  %v59 = vld [vmem:[%s47] sm:$0xff]
  %v60 = vld [vmem:[%s47 + $0x8] sm:$0xff]
  %v61 = vand.u32 2147483647, %v57
  %v62 = vand.u32 2147483647, %v58
  %v63 = vsub.f32 0.0, %v61
  %v64 = vsub.f32 0.0, %v62
  %v65 = vmul.f32 %v63, 1.442695
  %v66 = vpow.pop %v65
  %v67 = vmul.f32 %v64, 1.442695
  %v68 = vpow.pop %v67
  %v69 = vadd.f32 %v66, 1.0
  %v70 = vadd.f32 %v68, 1.0
  %v71 = vrcp.pop %v69
  %v72 = vmul.f32 1.0, %v71
  %v73 = vrcp.pop %v70
  %v74 = vmul.f32 1.0, %v73
  %vm75 = vcmp.ge.f32.partialorder %v57, 0.0
  %vm76 = vcmp.ge.f32.partialorder %v58, 0.0
  %v77 = vmul.f32 %v66, %v72
  %v78 = vmul.f32 %v68, %v74
  %v79 = vsel %vm75, %v72, %v77
  %v80 = vsel %vm76, %v74, %v78
  %v81 = vmax.f32 %v57, 0.0
  %v82 = vmax.f32 %v58, 0.0
  %v83 = vmul.f32 %v57, %v59
  %v84 = vmul.f32 %v58, %v60
  %v85 = vsub.f32 %v81, %v83
  %v86 = vsub.f32 %v82, %v84
  %v87 = vadd.f32 %v66, 1.0
  %v88 = vlog2.pop %v87
  %v89 = vmul.f32 %v88, 0.6931472
  %v90 = vmul.f32 -0.5, %v66
  %v91 = vadd.f32 %v90, 1.0
  %v92 = vmul.f32 %v91, %v66
  %v93 = vand.u32 2147483647, %v66
  %vm94 = vcmp.lt.f32.partialorder %v93, 0.0004427343
  %v95 = vsel %vm94, %v92, %v89
  %v96 = vadd.f32 %v68, 1.0
  %v97 = vlog2.pop %v96
  %v98 = vmul.f32 %v97, 0.6931472
  %v99 = vmul.f32 -0.5, %v68
  %v100 = vadd.f32 %v99, 1.0
  %v101 = vmul.f32 %v100, %v68
  %v102 = vand.u32 2147483647, %v68
  %vm103 = vcmp.lt.f32.partialorder %v102, 0.0004427343
  %v104 = vsel %vm103, %v101, %v98
  %v105 = vadd.f32 %v85, %v95
  %v106 = vadd.f32 %v86, %v104
  %v107 = vmax.f32 %v79, 1e-06
  %v108 = vmax.f32 %v80, 1e-06
  %v109 = vmin.f32 %v107, 0.999999
  %v110 = vmin.f32 %v108, 0.999999
  %v111 = vsub.f32 1.0, %v109
  %v112 = vsub.f32 1.0, %v110
  %v113 = vmul.f32 %v111, 0.75
  %v114 = vmul.f32 %v112, 0.75
  %v115 = vmul.f32 %v113, %v111
  %v116 = vmul.f32 %v114, %v112
  %v117 = vmul.f32 %v59, %v115
  %v118 = vmul.f32 %v60, %v116
  %v119 = vsub.f32 1.0, %v59
  %v120 = vsub.f32 1.0, %v60
  %v121 = vmul.f32 %v109, 0.25
  %v122 = vmul.f32 %v110, 0.25
  %v123 = vmul.f32 %v121, %v109
  %v124 = vmul.f32 %v122, %v110
  %v125 = vmul.f32 %v119, %v123
  %v126 = vmul.f32 %v120, %v124
  %v127 = vadd.f32 %v117, %v125
  %v128 = vadd.f32 %v118, %v126
  %v129 = vmul.f32 %v127, %v105
  %v130 = vmul.f32 %v128, %v106
  %v131 = vld [vmem:[#allocation2] sm:$0x3]
  %v132 = vmul.f32 %v79, %v59
  %v133 = vmul.f32 %v80, %v60
  %v134 = vrot.slane %v132, 4
  %v135 = vadd.f32 %v132, %v134
  %v136 = vrot.slane %v135, 2
  %v137 = vadd.f32 %v135, %v136
  %v138 = vrot.slane %v137, 1
  %v139 = vadd.f32 %v137, %v138
  %v140 = vrot.slane %v133, 4
  %v141 = vadd.f32 %v133, %v140
  %v142 = vrot.slane %v141, 2
  %v143 = vadd.f32 %v141, %v142
  %v144 = vrot.slane %v143, 1
  %v145 = vadd.f32 %v143, %v144
  %vm148 = vcmask 1041409
  %v149 = vsel %vm148, %v145, %v139
  %v151 = vadd.f32 %v131, %v149
  %152 = vst [vmem:[#allocation2] sm:$0x3] %v151
  %v153 = vld [vmem:[#allocation3] sm:$0x3]
  %v154 = vrot.slane %v79, 4
  %v155 = vadd.f32 %v79, %v154
  %v156 = vrot.slane %v155, 2
  %v157 = vadd.f32 %v155, %v156
  %v158 = vrot.slane %v157, 1
  %v159 = vadd.f32 %v157, %v158
  %v160 = vrot.slane %v80, 4
  %v161 = vadd.f32 %v80, %v160
  %v162 = vrot.slane %v161, 2
  %v163 = vadd.f32 %v161, %v162
  %v164 = vrot.slane %v163, 1
  %v165 = vadd.f32 %v163, %v164
  %v168 = vsel %vm148, %v165, %v159
  %v170 = vadd.f32 %v153, %v168
  %171 = vst [vmem:[#allocation3] sm:$0x3] %v170
  %v172 = vld [vmem:[#allocation4] sm:$0x3]
  %v173 = vrot.slane %v59, 4
  %v174 = vadd.f32 %v59, %v173
  %v175 = vrot.slane %v174, 2
  %v176 = vadd.f32 %v174, %v175
  %v177 = vrot.slane %v176, 1
  %v178 = vadd.f32 %v176, %v177
  %v179 = vrot.slane %v60, 4
  %v180 = vadd.f32 %v60, %v179
  %v181 = vrot.slane %v180, 2
  %v182 = vadd.f32 %v180, %v181
  %v183 = vrot.slane %v182, 1
  %v184 = vadd.f32 %v182, %v183
  %v187 = vsel %vm148, %v184, %v178
  %v189 = vadd.f32 %v172, %v187
  %190 = vst [vmem:[#allocation4] sm:$0x3] %v189
  %v191 = vld [vmem:[#allocation5] sm:$0x3]
  %v192 = vrot.slane %v129, 4
  %v193 = vadd.f32 %v129, %v192
  %v194 = vrot.slane %v193, 2
  %v195 = vadd.f32 %v193, %v194
  %v196 = vrot.slane %v195, 1
  %v197 = vadd.f32 %v195, %v196
  %v198 = vrot.slane %v130, 4
  %v199 = vadd.f32 %v130, %v198
  %v200 = vrot.slane %v199, 2
  %v201 = vadd.f32 %v199, %v200
  %v202 = vrot.slane %v201, 1
  %v203 = vadd.f32 %v201, %v202
  %v206 = vsel %vm148, %v203, %v197
  %v208 = vadd.f32 %v191, %v206
  %209 = vst [vmem:[#allocation5] sm:$0x3] %v208
  // Predicated region
  $region14: #{dice_focal_loss.1} parent=0 // pred_check
    %p210 = pneg %p49
  $region15: #{dice_focal_loss.1} parent=0 // pred_check_branch
    %212 = sbr.rel (%p210) target = $region17
  $region16: #{dice_focal_loss.1} parent=0 // pred_region
    %v213 = vld [vmem:[#allocation2] sm:$0x3]
    %vm214 = vcmask 1041408
    %v215 = vsel %vm214, %v213, 0.0
    %216 = vadd.xlane.f32.xlu0 %v215
    %v217 = vpop.xlane.xlu0 %216
    %vm218 = vcmask 1024
    %219 = vst.msk [vmem:[%s2] sm:$0x3] %vm218, %v217
    %v220 = vld [vmem:[#allocation3] sm:$0x3]
    %v221 = vsel %vm214, %v220, 0.0
    %222 = vadd.xlane.f32.xlu0 %v221
    %v223 = vpop.xlane.xlu0 %222
    %224 = vst.msk [vmem:[%s3] sm:$0x3] %vm218, %v223
    %v225 = vld [vmem:[#allocation4] sm:$0x3]
    %v226 = vsel %vm214, %v225, 0.0
    %227 = vadd.xlane.f32.xlu0 %v226
    %v228 = vpop.xlane.xlu0 %227
    %229 = vst.msk [vmem:[%s4] sm:$0x3] %vm218, %v228
    %v230 = vld [vmem:[#allocation5] sm:$0x3]
    %v231 = vsel %vm214, %v230, 0.0
    %232 = vadd.xlane.f32.xlu0 %v231
    %v233 = vpop.xlane.xlu0 %232
    %234 = vst.msk [vmem:[%s5] sm:$0x3] %vm218, %v233
  $region17: #{dice_focal_loss.1} parent=0 // pred_fallthru
    _
  // Predicated region
  $region18: #{dice_focal_loss.1} parent=0 // pred_check
    _
  $region19: #{dice_focal_loss.1} parent=0 // pred_check_branch
    %236 = sbr.rel (0) target = $region21
  $region20: #{dice_focal_loss.1} parent=0 // pred_region
    _
  $region21: #{dice_focal_loss.1} parent=0 // pred_fallthru
    _
  // Predicated region
  $region22: #{dice_focal_loss.1} parent=0 // pred_check
    _
  $region23: #{dice_focal_loss.1} parent=0 // pred_check_branch
    %238 = sbr.rel (0) target = $region25
  $region24: #{dice_focal_loss.1} parent=0 // pred_region
    _
  $region25: #{dice_focal_loss.1} parent=0 // pred_fallthru
    _
  // Predicated region
  $region26: #{dice_focal_loss.1} parent=0 // pred_check
    _
  $region27: #{dice_focal_loss.1} parent=0 // pred_check_branch
    %240 = sbr.rel (0) target = $region29
  $region28: #{dice_focal_loss.1} parent=0 // pred_region
    _
  $region29: #{dice_focal_loss.1} parent=0 // pred_fallthru
    _
  // Predicated region
  $region30: #{dice_focal_loss.1} parent=0 // pred_check
    _
  $region31: #{dice_focal_loss.1} parent=0 // pred_check_branch
    %242 = sbr.rel (0) target = $region33
  $region32: #{dice_focal_loss.1} parent=0 // pred_region
    _
  $region33: #{dice_focal_loss.1} parent=0 // pred_fallthru
    _
  // Predicated region
  $region34: #{dice_focal_loss.1} parent=0 // pred_check
    _
  $region35: #{dice_focal_loss.1} parent=0 // pred_check_branch
    %244 = sbr.rel (0) target = $region37
  $region36: #{dice_focal_loss.1} parent=0 // pred_region
    _
  $region37: #{dice_focal_loss.1} parent=0 // pred_fallthru
    _
  // Predicated region
  $region38: #{dice_focal_loss.1} parent=0 // pred_check
    _
  $region39: #{dice_focal_loss.1} parent=0 // pred_check_branch
    %246 = sbr.rel (0) target = $region41
  $region40: #{dice_focal_loss.1} parent=0 // pred_region
    _
  $region41: #{dice_focal_loss.1} parent=0 // pred_fallthru
    _
  // Predicated region
  $region42: #{dice_focal_loss.1} parent=0 // pred_check
    _
  $region43: #{dice_focal_loss.1} parent=0 // pred_check_branch
    %248 = sbr.rel (0) target = $region45
  $region44: #{dice_focal_loss.1} parent=0 // pred_region
    _
  $region45: #{dice_focal_loss.1} parent=0 // pred_fallthru
    _
  // Predicated region
  $region46: #{dice_focal_loss.1} parent=0 // pred_check
    _
  $region47: #{dice_focal_loss.1} parent=0 // pred_check_branch
    %250 = sbr.rel (0) target = $region49
  $region48: #{dice_focal_loss.1} parent=0 // pred_region
    _
  $region49: #{dice_focal_loss.1} parent=0 // pred_fallthru
    _

</llo_original>
